<compile_context>
chip_gen: v7x
topology: tpu7x:2x2x1
jax: 0.10.0
libtpu: 0.0.40
codegen_flags: <defaults>
</compile_context>

<pallas_src>
import functools

import jax
import jax.numpy as jnp
from jax import lax
from jax.experimental import pallas as pl
from jax.experimental.pallas import tpu as pltpu

EPS = 1e-5


def _round_up(a, b):
    return (a + b - 1) // b * b


def _vmem_budgets():
    """Return (tile_budget_bytes, vmem_limit_bytes), generation-aware."""
    phys = None
    try:
        info = pltpu.get_tpu_info()
        phys = getattr(info, "vmem_capacity_bytes", None)
    except Exception:  # not a TPU / API unavailable: fall back conservatively
        phys = None
    if not phys:
        phys = 64 * (1 << 20)  # v7x per-TC VMEM (smallest of v5e/v6e/v7x)
    phys = int(phys)
    tile_budget = (phys * 3) // 8  # sizing headroom below the scoped limit
    vmem_limit = phys // 2         # ~0.5x physical, handed to the compiler
    return tile_budget, vmem_limit


def _pick_channel_tile(c_pad, max_lanes, want_multi_step=True):
    """Largest multiple of 128 that divides c_pad and is <= max_lanes.

    When want_multi_step and c_pad >= 256, cap at c_pad // 2 so the 'parallel'
    channel grid has >= 2 steps (v7x has 2 TensorCores per chip).
    """
    limit = min(c_pad, max(128, max_lanes))
    if want_multi_step and c_pad >= 256:
        limit = min(limit, c_pad // 2)
    cand = (limit // 128) * 128
    while cand >= 128:
        if c_pad % cand == 0:
            return cand
        cand -= 128
    return 128


# ----------------------------------------------------------------------------
# Main path: whole batch resident per channel tile.
# ----------------------------------------------------------------------------
def _bn1d_resident_kernel(x_ref, gamma_ref, beta_ref, o_ref):
    # x_ref: (N, tc); gamma_ref / beta_ref: (1, C_pad) grid-resident; o_ref: (N, tc)
    n = x_ref.shape[0]
    tc = x_ref.shape[1]
    inv_n = jnp.float32(1.0 / n)
    col = pl.multiple_of(pl.program_id(0) * tc, 128)

    # Pass 1: per-channel mean (fresh read; no big f32 temporary kept live).
    mean = jnp.sum(x_ref[...].astype(jnp.float32), axis=0, keepdims=True) * inv_n

    # Pass 2: biased variance about the mean (robust vs. E[x^2] - mean^2).
    xc = x_ref[...].astype(jnp.float32) - mean
    var = jnp.sum(xc * xc, axis=0, keepdims=True) * inv_n
    inv_std = lax.rsqrt(var + EPS)  # EUP slot, effectively free

    # Fold affine into per-channel scale/shift (slice our lanes of gamma/beta).
    scale = gamma_ref[:, pl.ds(col, tc)] * inv_std
    shift = beta_ref[:, pl.ds(col, tc)] - mean * scale

    # Final pass: fresh read again; one mul + one add per element.
    o_ref[...] = (x_ref[...].astype(jnp.float32) * scale + shift).astype(o_ref.dtype)


# ----------------------------------------------------------------------------
# Large-N fallback: batch-tiled statistics + elementwise apply.
# ----------------------------------------------------------------------------
def _bn1d_stats_kernel(x_ref, gamma_ref, beta_ref, scale_ref, shift_ref,
                       pivot_sc, sum_sc, sq_sc, *, n_valid):
    """Accumulate pivot-shifted sum / sumsq over the batch grid axis."""
    i = pl.program_id(1)
    tn = x_ref.shape[0]

    @pl.when(i == 0)
    def _init():
        # Pivot = first row of this channel tile; conditions the sumsq
        # accumulation when |mean| >> std.
        pivot_sc[...] = x_ref[0:1, :].astype(jnp.float32)
        sum_sc[...] = jnp.zeros_like(sum_sc)
        sq_sc[...] = jnp.zeros_like(sq_sc)

    # Mask rows past the true batch size (batch was zero-padded to the tile).
    row = i * tn + lax.broadcasted_iota(jnp.int32, x_ref.shape, 0)
    valid = row < n_valid
    xc = jnp.where(valid, x_ref[...].astype(jnp.float32) - pivot_sc[...], 0.0)
    sum_sc[...] += jnp.sum(xc, axis=0, keepdims=True)
    sq_sc[...] += jnp.sum(xc * xc, axis=0, keepdims=True)

    @pl.when(i == pl.num_programs(1) - 1)
    def _finalize():
        inv_n = jnp.float32(1.0 / n_valid)
        mean_c = sum_sc[...] * inv_n                       # mean of (x - pivot)
        var = jnp.maximum(sq_sc[...] * inv_n - mean_c * mean_c, 0.0)
        inv_std = lax.rsqrt(var + EPS)
        scale = gamma_ref[...] * inv_std
        scale_ref[...] = scale
        shift_ref[...] = beta_ref[...] - (mean_c + pivot_sc[...]) * scale


def _bn1d_apply_kernel(x_ref, scale_ref, shift_ref, o_ref):
    o_ref[...] = (x_ref[...].astype(jnp.float32) * scale_ref[...]
                  + shift_ref[...]).astype(o_ref.dtype)


def _bn1d_batch_tiled(x_p, gamma2d, beta2d, *, n_valid, itemsize,
                      tile_budget, vmem_limit, batch_tile=None):
    n_rows, c_pad = x_p.shape
    tc = _pick_channel_tile(c_pad, 2048, want_multi_step=True)
    if batch_tile is not None:
        tn = batch_tile
    else:
        # Per-row bytes: 2x in + 2x out double buffers (native) + ~2 f32 slabs.
        bytes_per_row = tc * (4 * itemsize + 8)
        tn = max(8, min((tile_budget // bytes_per_row) // 8 * 8,
                        2048, _round_up(n_rows, 8)))
    n_pad = _round_up(n_rows, tn)
    if n_pad != n_rows:
        x_p = jnp.pad(x_p, ((0, n_pad - n_rows), (0, 0)))

    grid = (c_pad // tc, n_pad // tn)  # channels parallel, batch reduction last

    scale, shift = pl.pallas_call(
        functools.partial(_bn1d_stats_kernel, n_valid=n_valid),
        out_shape=(jax.ShapeDtypeStruct((1, c_pad), jnp.float32),
                   jax.ShapeDtypeStruct((1, c_pad), jnp.float32)),
        grid=grid,
        in_specs=[
            pl.BlockSpec((tn, tc), lambda j, i: (i, j)),
            pl.BlockSpec((1, tc), lambda j, i: (0, j)),
            pl.BlockSpec((1, tc), lambda j, i: (0, j)),
        ],
        out_specs=(
            pl.BlockSpec((1, tc), lambda j, i: (0, j)),
            pl.BlockSpec((1, tc), lambda j, i: (0, j)),
        ),
        scratch_shapes=[
            pltpu.VMEM((1, tc), jnp.float32),   # pivot
            pltpu.VMEM((1, tc), jnp.float32),   # sum
            pltpu.VMEM((1, tc), jnp.float32),   # sum of squares
        ],
        compiler_params=pltpu.CompilerParams(
            dimension_semantics=("parallel", "arbitrary"),
            vmem_limit_bytes=vmem_limit,
        ),
    )(x_p, gamma2d, beta2d)

    y = pl.pallas_call(
        _bn1d_apply_kernel,
        out_shape=jax.ShapeDtypeStruct((n_pad, c_pad), x_p.dtype),
        grid=grid,
        in_specs=[
            pl.BlockSpec((tn, tc), lambda j, i: (i, j)),
            pl.BlockSpec((1, tc), lambda j, i: (0, j)),
            pl.BlockSpec((1, tc), lambda j, i: (0, j)),
        ],
        out_specs=pl.BlockSpec((tn, tc), lambda j, i: (i, j)),
        compiler_params=pltpu.CompilerParams(
            dimension_semantics=("parallel", "parallel"),
            vmem_limit_bytes=vmem_limit,
        ),
    )(x_p, scale, shift)
    return y[:n_valid]


# ----------------------------------------------------------------------------
# Wrappers
# ----------------------------------------------------------------------------
def batch_norm_1d_pallas(x2d, gamma, beta, *, force_batch_tiled=False,
                         batch_tile=None):
    """x2d: (N, C) float array; gamma, beta: (C,) affine parameters."""
    n, c = x2d.shape
    itemsize = jnp.dtype(x2d.dtype).itemsize
    tile_budget, vmem_limit = _vmem_budgets()

    # Pad channels to a lane-dense multiple of 128; slice off afterwards.
    c_pad = _round_up(c, 128)
    gamma2d = jnp.pad(gamma.astype(jnp.float32), (0, c_pad - c)).reshape(1, c_pad)
    beta2d = jnp.pad(beta.astype(jnp.float32), (0, c_pad - c)).reshape(1, c_pad)
    x_p = jnp.pad(x2d, ((0, 0), (0, c_pad - c))) if c_pad != c else x2d

    # Whole-batch-resident footprint per lane column:
    #   2x input + 2x output double buffers (native dtype) + ~2 f32 slabs.
    bytes_per_col = n * (4 * itemsize + 8)
    max_lanes = (tile_budget // bytes_per_col) // 128 * 128

    if max_lanes >= 128 and not force_batch_tiled:
        tc = _pick_channel_tile(c_pad, max_lanes, want_multi_step=True)
        y = pl.pallas_call(
            _bn1d_resident_kernel,
            out_shape=jax.ShapeDtypeStruct((n, c_pad), x2d.dtype),
            grid=(c_pad // tc,),
            in_specs=[
                pl.BlockSpec((n, tc), lambda j: (0, j)),
                pl.BlockSpec((1, c_pad), lambda j: (0, 0)),  # resident, DMA'd once
                pl.BlockSpec((1, c_pad), lambda j: (0, 0)),  # resident, DMA'd once
            ],
            out_specs=pl.BlockSpec((n, tc), lambda j: (0, j)),
            compiler_params=pltpu.CompilerParams(
                dimension_semantics=("parallel",),
                vmem_limit_bytes=vmem_limit,
            ),
        )(x_p, gamma2d, beta2d)
    else:
        # TODO(synk): streaming fallback uses a pivot-shifted single-pass
        # variance; an exact two-pass would cost one extra full HBM sweep.
        y = _bn1d_batch_tiled(x_p, gamma2d, beta2d, n_valid=n,
                              itemsize=itemsize, tile_budget=tile_budget,
                              vmem_limit=vmem_limit, batch_tile=batch_tile)
    return y[:, :c] if c_pad != c else y


def batch_norm_1d_sq_unsq(x, gamma, beta, **kw):
    """Forward of BatchNorm1dSqUnsq (training-mode batch statistics)."""
    if x.ndim == 3:
        # (N, 1, C) -> squeeze(1) -> BN -> unsqueeze(1)
        y2d = batch_norm_1d_pallas(jnp.squeeze(x, axis=1), gamma, beta, **kw)
        return jnp.expand_dims(y2d, axis=1)
    return batch_norm_1d_pallas(x, gamma, beta, **kw)


def _reference(x, gamma, beta):
    """Plain-JAX reference for correctness checking."""
    x2d = jnp.squeeze(x, axis=1) if x.ndim == 3 else x
    mean = jnp.mean(x2d, axis=0, keepdims=True)
    var = jnp.mean((x2d - mean) ** 2, axis=0, keepdims=True)
    y = (x2d - mean) / jnp.sqrt(var + EPS) * gamma[None, :] + beta[None, :]
    return jnp.expand_dims(y, axis=1) if x.ndim == 3 else y


if __name__ == "__main__":
    key = jax.random.PRNGKey(0)
    k1, k2, k3, k4 = jax.random.split(key, 4)

    # --- Module-scale test: batch=8, hidden=32 (C < 128 -> padded lane-dense).
    batch, hidden = 8, 32
    gamma = 1.0 + 0.1 * jnp.arange(hidden, dtype=jnp.float32)
    beta = 0.01 * jnp.arange(hidden, dtype=jnp.float32)
    x3d = jax.random.normal(k1, (batch, 1, hidden), dtype=jnp.float32)  # squeeze path
    x2d = jax.random.normal(k2, (batch, hidden), dtype=jnp.float32)     # direct path

    y3d = jax.block_until_ready(batch_norm_1d_sq_unsq(x3d, gamma, beta))
    y2d = jax.block_until_ready(batch_norm_1d_sq_unsq(x2d, gamma, beta))
    assert y3d.shape == (batch, 1, hidden)
    assert y2d.shape == (batch, hidden)
    assert jnp.allclose(y3d, _reference(x3d, gamma, beta), atol=2e-5, rtol=1e-5)
    assert jnp.allclose(y2d, _reference(x2d, gamma, beta), atol=2e-5, rtol=1e-5)

    # --- Lane-dense multi-tile path: C multiple of 128 -> >= 2 channel steps;
    #     shifted/scaled data exercises the two-pass variance numerics.
    n_big, c_big = 64, 256
    gamma_b = 1.0 + 0.05 * jnp.arange(c_big, dtype=jnp.float32)
    beta_b = -0.02 * jnp.arange(c_big, dtype=jnp.float32)
    x_big = jax.random.normal(k3, (n_big, c_big), dtype=jnp.float32) * 2.0 + 3.0
    y_big = jax.block_until_ready(batch_norm_1d_sq_unsq(x_big, gamma_b, beta_b))
    assert y_big.shape == (n_big, c_big)
    assert jnp.allclose(y_big, _reference(x_big, gamma_b, beta_b),
                        atol=1e-4, rtol=1e-5)

    # --- Large-N fallback path, forced at small shapes: batch-tiled stats
    #     accumulation with a ragged batch (44 rows, tile 16) to exercise
    #     zero-padding + row masking + pl.when init/finalize.
    n_f, c_f = 44, 256
    gamma_f = 1.0 + 0.03 * jnp.arange(c_f, dtype=jnp.float32)
    beta_f = 0.05 * jnp.arange(c_f, dtype=jnp.float32)
    x_f = jax.random.normal(k4, (n_f, c_f), dtype=jnp.float32) - 1.5
    y_f = jax.block_until_ready(
        batch_norm_1d_sq_unsq(x_f, gamma_f, beta_f,
                              force_batch_tiled=True, batch_tile=16))
    assert y_f.shape == (n_f, c_f)
    assert jnp.allclose(y_f, _reference(x_f, gamma_f, beta_f),
                        atol=1e-4, rtol=1e-4)

    print("KERNEL_OK")
</pallas_src>

<mosaic_0001>
module attributes {stable_mosaic.version = 11 : i64} {
  func.func @_bn1d_resident_kernel(%arg0: i32, %arg1: memref<8x128xf32, #tpu.memory_space<vmem>>, %arg2: memref<1x128xf32, #tpu.memory_space<vmem>>, %arg3: memref<1x128xf32, #tpu.memory_space<vmem>>, %arg4: memref<8x128xf32, #tpu.memory_space<vmem>>) attributes {dimension_semantics = [#tpu.dimension_semantics<parallel>], iteration_bounds = array<i64: 1>, scalar_prefetch = 0 : i64, scratch_operands = 0 : i64, tpu.core_type = #tpu.core_type<tc>, window_params = [{transform_indices = @transform_0, window_bounds = array<i64: 8, 128>}, {pipeline_mode = #tpu.pipeline_mode<synchronous>, transform_indices = @transform_1, window_bounds = array<i64: 1, 128>}, {pipeline_mode = #tpu.pipeline_mode<synchronous>, transform_indices = @transform_2, window_bounds = array<i64: 1, 128>}, {transform_indices = @transform_3, window_bounds = array<i64: 8, 128>}]} {
    %c128_i32 = arith.constant 128 : i32
    %0 = arith.muli %arg0, %c128_i32 : i32
    %1 = tpu.assume_multiple %0, 128 : i32
    %c0 = arith.constant 0 : index
    %c0_0 = arith.constant 0 : index
    %2 = vector.load %arg1[%c0, %c0_0] : memref<8x128xf32, #tpu.memory_space<vmem>>, vector<8x128xf32>
    %cst = arith.constant dense<0.000000e+00> : vector<128xf32>
    %3 = vector.multi_reduction <add>, %2, %cst [0] : vector<8x128xf32> to vector<128xf32>
    %4 = vector.shape_cast %3 : vector<128xf32> to vector<1x128xf32>
    %cst_1 = arith.constant 1.250000e-01 : f32
    %5 = vector.broadcast %cst_1 : f32 to vector<1x128xf32>
    %6 = arith.mulf %4, %5 : vector<1x128xf32>
    %c0_2 = arith.constant 0 : index
    %c0_3 = arith.constant 0 : index
    %7 = vector.load %arg1[%c0_2, %c0_3] : memref<8x128xf32, #tpu.memory_space<vmem>>, vector<8x128xf32>
    %8 = vector.broadcast %6 : vector<1x128xf32> to vector<8x128xf32>
    %9 = arith.subf %7, %8 : vector<8x128xf32>
    %10 = arith.mulf %9, %9 : vector<8x128xf32>
    %cst_4 = arith.constant dense<0.000000e+00> : vector<128xf32>
    %11 = vector.multi_reduction <add>, %10, %cst_4 [0] : vector<8x128xf32> to vector<128xf32>
    %12 = vector.shape_cast %11 : vector<128xf32> to vector<1x128xf32>
    %cst_5 = arith.constant 1.250000e-01 : f32
    %13 = vector.broadcast %cst_5 : f32 to vector<1x128xf32>
    %14 = arith.mulf %12, %13 : vector<1x128xf32>
    %cst_6 = arith.constant 9.99999974E-6 : f32
    %15 = vector.broadcast %cst_6 : f32 to vector<1x128xf32>
    %16 = arith.addf %14, %15 : vector<1x128xf32>
    %17 = math.rsqrt %16 : vector<1x128xf32>
    %c0_7 = arith.constant 0 : index
    %18 = arith.index_cast %1 : i32 to index
    %19 = vector.load %arg2[%c0_7, %18] : memref<1x128xf32, #tpu.memory_space<vmem>>, vector<1x128xf32>
    %20 = arith.mulf %19, %17 : vector<1x128xf32>
    %c0_8 = arith.constant 0 : index
    %21 = arith.index_cast %1 : i32 to index
    %22 = vector.load %arg3[%c0_8, %21] : memref<1x128xf32, #tpu.memory_space<vmem>>, vector<1x128xf32>
    %23 = arith.mulf %6, %20 : vector<1x128xf32>
    %24 = arith.subf %22, %23 : vector<1x128xf32>
    %c0_9 = arith.constant 0 : index
    %c0_10 = arith.constant 0 : index
    %25 = vector.load %arg1[%c0_9, %c0_10] : memref<8x128xf32, #tpu.memory_space<vmem>>, vector<8x128xf32>
    %26 = vector.broadcast %20 : vector<1x128xf32> to vector<8x128xf32>
    %27 = arith.mulf %25, %26 : vector<8x128xf32>
    %28 = vector.broadcast %24 : vector<1x128xf32> to vector<8x128xf32>
    %29 = arith.addf %27, %28 : vector<8x128xf32>
    %c0_11 = arith.constant 0 : index
    %c0_12 = arith.constant 0 : index
    %30 = vector.load %arg4[%c0_11, %c0_12] : memref<8x128xf32, #tpu.memory_space<vmem>>, vector<8x128xf32>
    tpu.vector_store %arg4[%c0_11, %c0_12], %29 {strides = array<i32>} : memref<8x128xf32, #tpu.memory_space<vmem>>, vector<8x128xf32>,
    return
  }
  func.func @transform_0(%arg0: i32) -> (i32, i32) {
    %c0_i32 = arith.constant 0 : i32
    %c0_i32_0 = arith.constant 0 : i32
    return %c0_i32, %arg0 : i32, i32
  }
  func.func @transform_1(%arg0: i32) -> (i32, i32) {
    %c0_i32 = arith.constant 0 : i32
    %c0_i32_0 = arith.constant 0 : i32
    %c0_i32_1 = arith.constant 0 : i32
    return %c0_i32, %c0_i32_0 : i32, i32
  }
  func.func @transform_2(%arg0: i32) -> (i32, i32) {
    %c0_i32 = arith.constant 0 : i32
    %c0_i32_0 = arith.constant 0 : i32
    %c0_i32_1 = arith.constant 0 : i32
    return %c0_i32, %c0_i32_0 : i32, i32
  }
  func.func @transform_3(%arg0: i32) -> (i32, i32) {
    %c0_i32 = arith.constant 0 : i32
    %c0_i32_0 = arith.constant 0 : i32
    return %c0_i32, %arg0 : i32, i32
  }
}

</mosaic_0001>

<llo_original>
// kernel: tpu_custom_call.1
$region0: #{tpu_custom_call.1}
  #allocation0 [shape = 'u32[]', space=smem, size = 0x4, offset = 0x4, fixed_abs, tag = 'smem constant byte address 0x4 - core index']
  #allocation1 [shape = 'u32[144,128]{1,0:T(1,128)}', space=vmem, size = 0x12000, scoped, tag = 'internal scratch']
  %s0 = inlined_call_operand.hbm [shape: f32[8,128], index: 0, kind: input, shape index: {}]
  %s1 = inlined_call_operand.vmem [shape: f32[1,128], index: 1, kind: input, shape index: {}]
  %s2 = inlined_call_operand.vmem [shape: f32[1,128], index: 2, kind: input, shape index: {}]
  %s3 = inlined_call_operand.hbm [shape: f32[8,128], index: 3, kind: output, shape index: {}]
  %s4 = sld [smem:[#allocation0]]
  $region26: #{tpu_custom_call.1} parent=0
    _
  %s6 = ssub.s32 1, %s4
  %s7 = scalar_select 0, %s6, %s4
  $region1: #{tpu_custom_call.1} parent=0
    #allocation2 [shape = 'u8[4096]{0}', space=vmem, size = 0x1000, scoped, tag = 'input window, operand 0, single buffered']
    #allocation3 [shape = 's32[1]{0}', space=sflag, size = 0x4, scoped, tag = 'scoped memory for tpu_custom_call.1']
    #allocation4 [shape = 's32[1]{0}', space=sflag, size = 0x4, scoped, tag = 'scoped memory for tpu_custom_call.1']
    #allocation5 [shape = 'u8[4096]{0}', space=vmem, size = 0x1000, scoped, tag = 'output window, operand 0, single buffered']
    %8 = vsyncpa [#allocation3], 0
    %9 = vsyncpa [#allocation4], 0
    // Predicated region
    $region2: #{tpu_custom_call.1} parent=1 // pred_check
      _
    $region3: #{tpu_custom_call.1} parent=1 // pred_check_branch
      %11 = sbr.rel (0) target = $region5
    $region4: #{tpu_custom_call.1} parent=1 // pred_region
      %s13 = ssub.s32 128, 128
      %14 = vsyncadd [#allocation3], %s13
      %s16 = sshll.u32 [#allocation2], 4
      %s17 = int_to_ptr.vmem [resolvable:$true] %s16
      %19 = dma.hbm_to_vmem [thread:$0]  %s0, 128, %s17, [#allocation3]
    $region5: #{tpu_custom_call.1} parent=1 // pred_fallthru
      _
    // Predicated region
    $region6: #{tpu_custom_call.1} parent=1 // pred_check
      _
    $region7: #{tpu_custom_call.1} parent=1 // pred_check_branch
      %21 = sbr.rel (0) target = $region9
    $region8: #{tpu_custom_call.1} parent=1 // pred_region
      _
    $region9: #{tpu_custom_call.1} parent=1 // pred_fallthru
      _
    // Predicated region
    $region10: #{tpu_custom_call.1} parent=1 // pred_check
      _
    $region11: #{tpu_custom_call.1} parent=1 // pred_check_branch
      %23 = sbr.rel (0) target = $region13
    $region12: #{tpu_custom_call.1} parent=1 // pred_region
      _
    $region13: #{tpu_custom_call.1} parent=1 // pred_fallthru
      _
    // Predicated region
    $region14: #{tpu_custom_call.1} parent=1 // pred_check
      _
    $region15: #{tpu_custom_call.1} parent=1 // pred_check_branch
      %25 = sbr.rel (0) target = $region17
    $region16: #{tpu_custom_call.1} parent=1 // pred_region
      %26 = dma.done [#allocation3], 128
    $region17: #{tpu_custom_call.1} parent=1 // pred_fallthru
      _
    %s27 = smul.u32 0, 128
    %v28 = vld [vmem:[#allocation2] sm:$0xff]
    %v29 = vrot.slane %v28, 4
    %v30 = vadd.f32 %v28, %v29
    %v31 = vrot.slane %v30, 2
    %v32 = vadd.f32 %v30, %v31
    %v33 = vrot.slane %v32, 1
    %v34 = vadd.f32 %v32, %v33
    %v35 = vmul.f32 %v34, 0.125
    %v36 = vsub.f32 %v28, %v35
    %v37 = vmul.f32 %v36, %v36
    %v38 = vrot.slane %v37, 4
    %v39 = vadd.f32 %v37, %v38
    %v40 = vrot.slane %v39, 2
    %v41 = vadd.f32 %v39, %v40
    %v42 = vrot.slane %v41, 1
    %v43 = vadd.f32 %v41, %v42
    %v44 = vmul.f32 %v43, 0.125
    %v45 = vadd.f32 %v44, 1e-05
    %v46 = vrsqrt.pop %v45
    %s47 = sshra.s32 %s27, 7
    %s48 = sand.u32 %s27, 127
    %s49 = scalar_lea.vmem %s1, %s47
    %v50 = vld [vmem:[%s49] sm:$0x1]
    %v51 = vmul.f32 %v50, %v46
    %s52 = scalar_lea.vmem %s2, %s47
    %v53 = vld [vmem:[%s52] sm:$0x1]
    %v54 = vmul.f32 %v35, %v51
    %v55 = vsub.f32 %v53, %v54
    %v57 = vlaneseq
    %v58 = vshrl.u32 %v57, 7
    %v59 = vsub.s32 0, %v58
    %v60 = vrot.slane %v51, %v59
    %v62 = vmul.f32 %v28, %v60
    %v64 = vlaneseq
    %v65 = vshrl.u32 %v64, 7
    %v66 = vsub.s32 0, %v65
    %v67 = vrot.slane %v55, %v66
    %v69 = vadd.f32 %v62, %v67
    %70 = vst [vmem:[#allocation5] sm:$0xff] %v69
    // Predicated region
    $region18: #{tpu_custom_call.1} parent=1 // pred_check
      _
    $region19: #{tpu_custom_call.1} parent=1 // pred_check_branch
      %72 = sbr.rel (0) target = $region21
    $region20: #{tpu_custom_call.1} parent=1 // pred_region
      %s74 = ssub.s32 128, 128
      %75 = vsyncadd [#allocation4], %s74
      %s77 = sshll.u32 [#allocation5], 4
      %s78 = int_to_ptr.vmem [resolvable:$true] %s77
      %80 = dma.vmem_to_hbm [thread:$0]  %s78, 128, %s3, [#allocation4]
    $region21: #{tpu_custom_call.1} parent=1 // pred_fallthru
      _
    // Predicated region
    $region22: #{tpu_custom_call.1} parent=1 // pred_check
      _
    $region23: #{tpu_custom_call.1} parent=1 // pred_check_branch
      %82 = sbr.rel (0) target = $region25
    $region24: #{tpu_custom_call.1} parent=1 // pred_region
      %83 = dma.done [#allocation4], 128
    $region25: #{tpu_custom_call.1} parent=1 // pred_fallthru
      _
    %84 = vsyncpa [#allocation3], 1
    %85 = vsyncpa [#allocation4], 1

</llo_original>
